<compile_context>
chip_gen: v7x
topology: tpu7x:2x2x1
jax: 0.10.0
libtpu: 0.0.40
codegen_flags: <defaults>
</compile_context>

<pallas_src>
import jax
import jax.numpy as jnp
from jax.experimental import pallas as pl
from jax.experimental.pallas import tpu as pltpu

LN_EPS = 1e-5        # PyTorch nn.LayerNorm default
L2_EPS = 1e-12       # guards the final L2 normalize against all-zero rows

_SINGLE_BUFFER_OK = True   # flipped to False once if pl.Buffered(1) is rejected


def _round_up(x, m):
    return (x + m - 1) // m * m


def _vmem_budget_and_limit():
    """Generation-aware (tile-picking budget, scoped-vmem limit) in bytes."""
    phys = None
    try:
        phys = int(pltpu.get_tpu_info().vmem_capacity_bytes)
    except Exception:
        phys = None
    if phys is None:
        try:
            kind = jax.devices()[0].device_kind.lower()
        except Exception:
            kind = ""
        if "v5" in kind or "v6" in kind:
            phys = 128 * 2**20
        elif "v7" in kind:
            phys = 64 * 2**20
    if phys is None:
        return 24 * 2**20, 48 * 2**20          # unknown chip: stay conservative
    if phys >= 100 * 2**20:                    # v5e / v6e: 128 MiB physical
        return 56 * 2**20, 96 * 2**20
    return 36 * 2**20, 48 * 2**20              # v7x: 64 MiB physical


def _pick_row_tile(m_rows, d, c, x_bytes, w_bytes, out_bytes, budget,
                   single_buffer_consts):
    """Largest row tile (<=1024) that fits the VMEM budget, MXU-friendly."""
    n_const_buf = 1 if single_buffer_consts else 2
    const_bytes = n_const_buf * (d * c * w_bytes + 8 * c * 4)
    # per-row: x double buffer + out double buffer + ~6 f32 temps of width c
    per_row = 2 * d * x_bytes + 2 * c * out_bytes + 6 * c * 4
    avail = budget - const_bytes
    if avail < 8 * per_row:
        # TODO(synk): switch to the K-tiled accumulator kernel instead of tm=8
        tm = 8
    else:
        tm = min(1024, avail // per_row)
    if tm >= 512:
        tm = (tm // 256) * 256     # v6e/v7x MXU pass granularity
    elif tm >= 128:
        tm = (tm // 128) * 128     # v5e MXU pass granularity
    else:
        tm = max(8, (tm // 8) * 8)
    tm = min(tm, _round_up(m_rows, 8))
    return int(tm)


def _decoder_kernel(x_ref, w_ref, p_ref, o_ref):
    # x_ref: (TM, D) input rows (native dtype; a partial tail block is masked on
    #        write-back, so garbage tail rows never reach HBM)
    # w_ref: (D, C)  linear weight (pre-transposed), block-invariant
    # p_ref: (8, C)  f32 packed params: row0 = bias, row1 = gamma, row2 = beta
    # o_ref: (TM, C) output tile
    p = p_ref[...]
    # MXU matmul in native dtype, f32 accumulation.
    y = jnp.dot(x_ref[...], w_ref[...], preferred_element_type=jnp.float32)
    y = y + p[0:1, :]

    # Two-pass LayerNorm (y is VMEM-resident; avoids E[x^2]-E[x]^2 cancellation)
    mean = jnp.mean(y, axis=-1, keepdims=True)
    d = y - mean
    var = jnp.mean(d * d, axis=-1, keepdims=True)
    yn = d * jax.lax.rsqrt(var + LN_EPS)
    yn = yn * p[1:2, :] + p[2:3, :]

    # L2 normalize over the class dim (clip_norm_type == 'l2').
    l2sq = jnp.sum(yn * yn, axis=-1, keepdims=True)
    o_ref[...] = (yn * jax.lax.rsqrt(l2sq + L2_EPS)).astype(o_ref.dtype)


def _build_call(M, D, C, tm, out_dtype, vmem_limit, single_buffer_consts):
    const_kwargs = {}
    if single_buffer_consts:
        # Block-invariant operands: DMA'd once, keep only one VMEM buffer.
        const_kwargs["pipeline_mode"] = pl.Buffered(1)
    return pl.pallas_call(
        _decoder_kernel,
        out_shape=jax.ShapeDtypeStruct((M, C), out_dtype),
        grid_spec=pltpu.PrefetchScalarGridSpec(
            num_scalar_prefetch=0,
            grid=(pl.cdiv(M, tm),),
            in_specs=[
                pl.BlockSpec((tm, D), lambda i: (i, 0)),
                pl.BlockSpec((D, C), lambda i: (0, 0), **const_kwargs),
                pl.BlockSpec((8, C), lambda i: (0, 0), **const_kwargs),
            ],
            out_specs=pl.BlockSpec((tm, C), lambda i: (i, 0)),
        ),
        compiler_params=pltpu.CompilerParams(
            dimension_semantics=("parallel",),
            vmem_limit_bytes=int(vmem_limit),
        ),
    )


def linear_decoder(x, w, b, gamma, beta, *, tm=None):
    """x: (..., D) -> (..., C).  w: (D, C) (== W^T); b, gamma, beta: (C,)."""
    global _SINGLE_BUFFER_OK
    D = x.shape[-1]
    C = w.shape[-1]
    assert w.shape[0] == D

    lead = x.shape[:-1]
    x2 = x.reshape(-1, D)
    M = x2.shape[0]

    # Pack bias / gamma / beta into one (8, C) f32 operand (rows 0..2 used).
    params = jnp.concatenate(
        [b.reshape(1, C).astype(jnp.float32),
         gamma.reshape(1, C).astype(jnp.float32),
         beta.reshape(1, C).astype(jnp.float32),
         jnp.zeros((5, C), jnp.float32)], axis=0)

    budget, vmem_limit = _vmem_budget_and_limit()

    modes = (True, False) if _SINGLE_BUFFER_OK else (False,)
    last_err = None
    for single in modes:
        tile = tm
        if tile is None:
            tile = _pick_row_tile(M, D, C, x.dtype.itemsize, w.dtype.itemsize,
                                  x.dtype.itemsize, budget, single)
        tile = max(8, (int(tile) // 8) * 8)
        tile = min(tile, _round_up(M, 8))
        try:
            call = _build_call(M, D, C, tile, x.dtype, vmem_limit, single)
            out = call(x2, w, params)
            _SINGLE_BUFFER_OK = single
            return out.reshape(*lead, C)
        except Exception as e:   # e.g. pl.Buffered(1) rejected -> default pipeline
            last_err = e
            continue
    raise last_err


def _xavier_uniform(key, fan_in, fan_out, dtype=jnp.float32):
    # matches torch.nn.init.xavier_uniform_ for a (fan_out, fan_in) weight
    limit = (6.0 / (fan_in + fan_out)) ** 0.5
    return jax.random.uniform(key, (fan_in, fan_out), dtype, -limit, limit)


if __name__ == "__main__":
    # Small shapes consistent with the module's forward: x of (B, N, embed_dim)
    B, N, D, C = 2, 8, 32, 32   # embed_dim=32, num_classes=32

    key = jax.random.PRNGKey(0)
    kx, kw = jax.random.split(key)

    x = jax.random.normal(kx, (B, N, D), jnp.float32)

    # Parameters mirroring _init_weights:
    #   Linear: xavier_uniform weight, zero bias; LayerNorm: weight=1, bias=0
    w = _xavier_uniform(kw, D, C)          # stored as (D, C) == W^T
    b = jnp.zeros((C,), jnp.float32)
    gamma = jnp.ones((C,), jnp.float32)
    beta = jnp.zeros((C,), jnp.float32)

    out = linear_decoder(x, w, b, gamma, beta)
    out = jax.block_until_ready(out)

    # Pure-JAX reference (same math as the PyTorch module).
    y_ref = x @ w + b
    mu = y_ref.mean(-1, keepdims=True)
    var = ((y_ref - mu) ** 2).mean(-1, keepdims=True)
    y_ref = (y_ref - mu) / jnp.sqrt(var + LN_EPS) * gamma + beta
    y_ref = y_ref / jnp.linalg.norm(y_ref, axis=-1, keepdims=True)

    assert out.shape == (B, N, C)
    err = float(jnp.max(jnp.abs(out - y_ref)))
    assert err < 1e-4, err

    print("KERNEL_OK")
</pallas_src>

<mosaic_0001>
module attributes {stable_mosaic.version = 11 : i64} {
  func.func @_decoder_kernel(%arg0: i32, %arg1: memref<16x32xf32, #tpu.memory_space<vmem>>, %arg2: memref<32x32xf32, #tpu.memory_space<vmem>>, %arg3: memref<8x32xf32, #tpu.memory_space<vmem>>, %arg4: memref<16x32xf32, #tpu.memory_space<vmem>>) attributes {dimension_semantics = [#tpu.dimension_semantics<parallel>], iteration_bounds = array<i64: 1>, scalar_prefetch = 0 : i64, scratch_operands = 0 : i64, tpu.core_type = #tpu.core_type<tc>, window_params = [{transform_indices = @transform_0, window_bounds = array<i64: 16, 32>}, {pipeline_mode = #tpu.pipeline_mode<synchronous>, transform_indices = @transform_1, window_bounds = array<i64: 32, 32>}, {pipeline_mode = #tpu.pipeline_mode<synchronous>, transform_indices = @transform_2, window_bounds = array<i64: 8, 32>}, {transform_indices = @transform_3, window_bounds = array<i64: 16, 32>}]} {
    %c0 = arith.constant 0 : index
    %c0_0 = arith.constant 0 : index
    %0 = vector.load %arg3[%c0, %c0_0] : memref<8x32xf32, #tpu.memory_space<vmem>>, vector<8x32xf32>
    %c0_1 = arith.constant 0 : index
    %c0_2 = arith.constant 0 : index
    %1 = vector.load %arg1[%c0_1, %c0_2] : memref<16x32xf32, #tpu.memory_space<vmem>>, vector<16x32xf32>
    %c0_3 = arith.constant 0 : index
    %c0_4 = arith.constant 0 : index
    %2 = vector.load %arg2[%c0_3, %c0_4] : memref<32x32xf32, #tpu.memory_space<vmem>>, vector<32x32xf32>
    %cst = arith.constant dense<0.000000e+00> : vector<16x32xf32>
    %3 = tpu.matmul %1, %2, %cst {dimension_numbers = #tpu.dot_dimension_numbers<[1], [0], [0], [1], [0, 0, 1, 1], [], []>} : vector<16x32xf32>, vector<32x32xf32>, vector<16x32xf32> -> vector<16x32xf32>
    %4 = vector.extract_strided_slice %0 {offsets = [0, 0], sizes = [1, 32], strides = [1, 1]} : vector<8x32xf32> to vector<1x32xf32>
    %5 = vector.broadcast %4 : vector<1x32xf32> to vector<16x32xf32>
    %6 = arith.addf %3, %5 : vector<16x32xf32>
    %cst_5 = arith.constant dense<0.000000e+00> : vector<16xf32>
    %7 = vector.multi_reduction <add>, %6, %cst_5 [1] : vector<16x32xf32> to vector<16xf32>
    %8 = vector.shape_cast %7 : vector<16xf32> to vector<16x1xf32>
    %cst_6 = arith.constant 3.200000e+01 : f32
    %9 = vector.broadcast %cst_6 : f32 to vector<16x1xf32>
    %10 = arith.divf %8, %9 : vector<16x1xf32>
    %11 = vector.broadcast %10 : vector<16x1xf32> to vector<16x32xf32>
    %12 = arith.subf %6, %11 : vector<16x32xf32>
    %13 = arith.mulf %12, %12 : vector<16x32xf32>
    %cst_7 = arith.constant dense<0.000000e+00> : vector<16xf32>
    %14 = vector.multi_reduction <add>, %13, %cst_7 [1] : vector<16x32xf32> to vector<16xf32>
    %15 = vector.shape_cast %14 : vector<16xf32> to vector<16x1xf32>
    %cst_8 = arith.constant 3.200000e+01 : f32
    %16 = vector.broadcast %cst_8 : f32 to vector<16x1xf32>
    %17 = arith.divf %15, %16 : vector<16x1xf32>
    %cst_9 = arith.constant 9.99999974E-6 : f32
    %18 = vector.broadcast %cst_9 : f32 to vector<16x1xf32>
    %19 = arith.addf %17, %18 : vector<16x1xf32>
    %20 = math.rsqrt %19 : vector<16x1xf32>
    %21 = vector.broadcast %20 : vector<16x1xf32> to vector<16x32xf32>
    %22 = arith.mulf %12, %21 : vector<16x32xf32>
    %23 = vector.extract_strided_slice %0 {offsets = [1, 0], sizes = [1, 32], strides = [1, 1]} : vector<8x32xf32> to vector<1x32xf32>
    %24 = vector.broadcast %23 : vector<1x32xf32> to vector<16x32xf32>
    %25 = arith.mulf %22, %24 : vector<16x32xf32>
    %26 = vector.extract_strided_slice %0 {offsets = [2, 0], sizes = [1, 32], strides = [1, 1]} : vector<8x32xf32> to vector<1x32xf32>
    %27 = vector.broadcast %26 : vector<1x32xf32> to vector<16x32xf32>
    %28 = arith.addf %25, %27 : vector<16x32xf32>
    %29 = arith.mulf %28, %28 : vector<16x32xf32>
    %cst_10 = arith.constant dense<0.000000e+00> : vector<16xf32>
    %30 = vector.multi_reduction <add>, %29, %cst_10 [1] : vector<16x32xf32> to vector<16xf32>
    %31 = vector.shape_cast %30 : vector<16xf32> to vector<16x1xf32>
    %cst_11 = arith.constant 9.99999996E-13 : f32
    %32 = vector.broadcast %cst_11 : f32 to vector<16x1xf32>
    %33 = arith.addf %31, %32 : vector<16x1xf32>
    %34 = math.rsqrt %33 : vector<16x1xf32>
    %35 = vector.broadcast %34 : vector<16x1xf32> to vector<16x32xf32>
    %36 = arith.mulf %28, %35 : vector<16x32xf32>
    %c0_12 = arith.constant 0 : index
    %c0_13 = arith.constant 0 : index
    %37 = vector.load %arg4[%c0_12, %c0_13] : memref<16x32xf32, #tpu.memory_space<vmem>>, vector<16x32xf32>
    tpu.vector_store %arg4[%c0_12, %c0_13], %36 {strides = array<i32>} : memref<16x32xf32, #tpu.memory_space<vmem>>, vector<16x32xf32>,
    return
  }
  func.func @transform_0(%arg0: i32) -> (i32, i32) {
    %c0_i32 = arith.constant 0 : i32
    %c0_i32_0 = arith.constant 0 : i32
    return %arg0, %c0_i32 : i32, i32
  }
  func.func @transform_1(%arg0: i32) -> (i32, i32) {
    %c0_i32 = arith.constant 0 : i32
    %c0_i32_0 = arith.constant 0 : i32
    %c0_i32_1 = arith.constant 0 : i32
    return %c0_i32, %c0_i32_0 : i32, i32
  }
  func.func @transform_2(%arg0: i32) -> (i32, i32) {
    %c0_i32 = arith.constant 0 : i32
    %c0_i32_0 = arith.constant 0 : i32
    %c0_i32_1 = arith.constant 0 : i32
    return %c0_i32, %c0_i32_0 : i32, i32
  }
  func.func @transform_3(%arg0: i32) -> (i32, i32) {
    %c0_i32 = arith.constant 0 : i32
    %c0_i32_0 = arith.constant 0 : i32
    return %arg0, %c0_i32 : i32, i32
  }
}

module attributes {stable_mosaic.version = 11 : i64} {
  func.func @_decoder_kernel(%arg0: i32, %arg1: memref<16x32xf32, #tpu.memory_space<vmem>>, %arg2: memref<32x32xf32, #tpu.memory_space<vmem>>, %arg3: memref<8x32xf32, #tpu.memory_space<vmem>>, %arg4: memref<16x32xf32, #tpu.memory_space<vmem>>) attributes {dimension_semantics = [#tpu.dimension_semantics<parallel>], iteration_bounds = array<i64: 1>, scalar_prefetch = 0 : i64, scratch_operands = 0 : i64, tpu.core_type = #tpu.core_type<tc>, window_params = [{transform_indices = @transform_0, window_bounds = array<i64: 16, 32>}, {pipeline_mode = #tpu.pipeline_mode<synchronous>, transform_indices = @transform_1, window_bounds = array<i64: 32, 32>}, {pipeline_mode = #tpu.pipeline_mode<synchronous>, transform_indices = @transform_2, window_bounds = array<i64: 8, 32>}, {transform_indices = @transform_3, window_bounds = array<i64: 16, 32>}]} {
    %c0 = arith.constant 0 : index
    %c0_0 = arith.constant 0 : index
    %0 = vector.load %arg3[%c0, %c0_0] : memref<8x32xf32, #tpu.memory_space<vmem>>, vector<8x32xf32>
    %c0_1 = arith.constant 0 : index
    %c0_2 = arith.constant 0 : index
    %1 = vector.load %arg1[%c0_1, %c0_2] : memref<16x32xf32, #tpu.memory_space<vmem>>, vector<16x32xf32>
    %c0_3 = arith.constant 0 : index
    %c0_4 = arith.constant 0 : index
    %2 = vector.load %arg2[%c0_3, %c0_4] : memref<32x32xf32, #tpu.memory_space<vmem>>, vector<32x32xf32>
    %cst = arith.constant dense<0.000000e+00> : vector<16x32xf32>
    %3 = tpu.matmul %1, %2, %cst {dimension_numbers = #tpu.dot_dimension_numbers<[1], [0], [0], [1], [0, 0, 1, 1], [], []>} : vector<16x32xf32>, vector<32x32xf32>, vector<16x32xf32> -> vector<16x32xf32>
    %4 = vector.extract_strided_slice %0 {offsets = [0, 0], sizes = [1, 32], strides = [1, 1]} : vector<8x32xf32> to vector<1x32xf32>
    %5 = vector.broadcast %4 : vector<1x32xf32> to vector<16x32xf32>
    %6 = arith.addf %3, %5 : vector<16x32xf32>
    %cst_5 = arith.constant dense<0.000000e+00> : vector<16xf32>
    %7 = vector.multi_reduction <add>, %6, %cst_5 [1] : vector<16x32xf32> to vector<16xf32>
    %8 = vector.shape_cast %7 : vector<16xf32> to vector<16x1xf32>
    %cst_6 = arith.constant 3.200000e+01 : f32
    %9 = vector.broadcast %cst_6 : f32 to vector<16x1xf32>
    %10 = arith.divf %8, %9 : vector<16x1xf32>
    %11 = vector.broadcast %10 : vector<16x1xf32> to vector<16x32xf32>
    %12 = arith.subf %6, %11 : vector<16x32xf32>
    %13 = arith.mulf %12, %12 : vector<16x32xf32>
    %cst_7 = arith.constant dense<0.000000e+00> : vector<16xf32>
    %14 = vector.multi_reduction <add>, %13, %cst_7 [1] : vector<16x32xf32> to vector<16xf32>
    %15 = vector.shape_cast %14 : vector<16xf32> to vector<16x1xf32>
    %cst_8 = arith.constant 3.200000e+01 : f32
    %16 = vector.broadcast %cst_8 : f32 to vector<16x1xf32>
    %17 = arith.divf %15, %16 : vector<16x1xf32>
    %cst_9 = arith.constant 9.99999974E-6 : f32
    %18 = vector.broadcast %cst_9 : f32 to vector<16x1xf32>
    %19 = arith.addf %17, %18 : vector<16x1xf32>
    %20 = math.rsqrt %19 : vector<16x1xf32>
    %21 = vector.broadcast %20 : vector<16x1xf32> to vector<16x32xf32>
    %22 = arith.mulf %12, %21 : vector<16x32xf32>
    %23 = vector.extract_strided_slice %0 {offsets = [1, 0], sizes = [1, 32], strides = [1, 1]} : vector<8x32xf32> to vector<1x32xf32>
    %24 = vector.broadcast %23 : vector<1x32xf32> to vector<16x32xf32>
    %25 = arith.mulf %22, %24 : vector<16x32xf32>
    %26 = vector.extract_strided_slice %0 {offsets = [2, 0], sizes = [1, 32], strides = [1, 1]} : vector<8x32xf32> to vector<1x32xf32>
    %27 = vector.broadcast %26 : vector<1x32xf32> to vector<16x32xf32>
    %28 = arith.addf %25, %27 : vector<16x32xf32>
    %29 = arith.mulf %28, %28 : vector<16x32xf32>
    %cst_10 = arith.constant dense<0.000000e+00> : vector<16xf32>
    %30 = vector.multi_reduction <add>, %29, %cst_10 [1] : vector<16x32xf32> to vector<16xf32>
    %31 = vector.shape_cast %30 : vector<16xf32> to vector<16x1xf32>
    %cst_11 = arith.constant 9.99999996E-13 : f32
    %32 = vector.broadcast %cst_11 : f32 to vector<16x1xf32>
    %33 = arith.addf %31, %32 : vector<16x1xf32>
    %34 = math.rsqrt %33 : vector<16x1xf32>
    %35 = vector.broadcast %34 : vector<16x1xf32> to vector<16x32xf32>
    %36 = arith.mulf %28, %35 : vector<16x32xf32>
    %c0_12 = arith.constant 0 : index
    %c0_13 = arith.constant 0 : index
    %37 = vector.load %arg4[%c0_12, %c0_13] : memref<16x32xf32, #tpu.memory_space<vmem>>, vector<16x32xf32>
    tpu.vector_store %arg4[%c0_12, %c0_13], %36 {strides = array<i32>} : memref<16x32xf32, #tpu.memory_space<vmem>>, vector<16x32xf32>,
    return
  }
  func.func @transform_0(%arg0: i32) -> (i32, i32) {
    %c0_i32 = arith.constant 0 : i32
    %c0_i32_0 = arith.constant 0 : i32
    return %arg0, %c0_i32 : i32, i32
  }
  func.func @transform_1(%arg0: i32) -> (i32, i32) {
    %c0_i32 = arith.constant 0 : i32
    %c0_i32_0 = arith.constant 0 : i32
    %c0_i32_1 = arith.constant 0 : i32
    return %c0_i32, %c0_i32_0 : i32, i32
  }
  func.func @transform_2(%arg0: i32) -> (i32, i32) {
    %c0_i32 = arith.constant 0 : i32
    %c0_i32_0 = arith.constant 0 : i32
    %c0_i32_1 = arith.constant 0 : i32
    return %c0_i32, %c0_i32_0 : i32, i32
  }
  func.func @transform_3(%arg0: i32) -> (i32, i32) {
    %c0_i32 = arith.constant 0 : i32
    %c0_i32_0 = arith.constant 0 : i32
    return %arg0, %c0_i32 : i32, i32
  }
}

</mosaic_0001>

<llo_original>
// kernel: tpu_custom_call.1
$region0: #{tpu_custom_call.1}
  #allocation0 [shape = 'u32[]', space=smem, size = 0x4, offset = 0x4, fixed_abs, tag = 'smem constant byte address 0x4 - core index']
  #allocation1 [shape = 'u32[144,128]{1,0:T(1,128)}', space=vmem, size = 0x12000, scoped, tag = 'internal scratch']
  %s0 = inlined_call_operand.hbm [shape: f32[16,32], index: 0, kind: input, shape index: {}]
  %s1 = inlined_call_operand.hbm [shape: f32[32,32], index: 1, kind: input, shape index: {}]
  %s2 = inlined_call_operand.hbm [shape: f32[8,32], index: 2, kind: input, shape index: {}]
  %s3 = inlined_call_operand.hbm [shape: f32[16,32], index: 3, kind: output, shape index: {}]
  %s4 = sld [smem:[#allocation0]]
  $region34: #{tpu_custom_call.1} parent=0
    _
  %s6 = ssub.s32 1, %s4
  %s7 = scalar_select 0, %s6, %s4
  $region1: #{tpu_custom_call.1} parent=0
    #allocation2 [shape = 'u8[8192]{0}', space=vmem, size = 0x2000, scoped, tag = 'input window, operand 0, single buffered']
    #allocation3 [shape = 's32[1]{0}', space=sflag, size = 0x4, scoped, tag = 'scoped memory for tpu_custom_call.1']
    #allocation4 [shape = 's32[1]{0}', space=sflag, size = 0x4, scoped, tag = 'scoped memory for tpu_custom_call.1']
    #allocation5 [shape = 'u8[16384]{0}', space=vmem, size = 0x4000, scoped, tag = 'input window, operand 1, single buffered']
    #allocation6 [shape = 's32[1]{0}', space=sflag, size = 0x4, scoped, tag = 'scoped memory for tpu_custom_call.1']
    #allocation7 [shape = 'u8[4096]{0}', space=vmem, size = 0x1000, scoped, tag = 'input window, operand 2, single buffered']
    #allocation8 [shape = 'u8[8192]{0}', space=vmem, size = 0x2000, scoped, tag = 'output window, operand 0, single buffered']
    %8 = vsyncpa [#allocation3], 0
    %9 = vsyncpa [#allocation6], 0
    %10 = vsyncpa [#allocation4], 0
    // Predicated region
    $region2: #{tpu_custom_call.1} parent=1 // pred_check
      _
    $region3: #{tpu_custom_call.1} parent=1 // pred_check_branch
      %12 = sbr.rel (0) target = $region5
    $region4: #{tpu_custom_call.1} parent=1 // pred_region
      %s14 = ssub.s32 256, 256
      %15 = vsyncadd [#allocation3], %s14
      %s16 = sshll.u32 [#allocation2], 4
      %s17 = int_to_ptr.vmem [resolvable:$true] %s16
      %22 = dma.hbm_to_vmem [thread:$0]  %s0, 256, %s17, [#allocation3], 128, 128, 8
    $region5: #{tpu_custom_call.1} parent=1 // pred_fallthru
      _
    // Predicated region
    $region6: #{tpu_custom_call.1} parent=1 // pred_check
      _
    $region7: #{tpu_custom_call.1} parent=1 // pred_check_branch
      %24 = sbr.rel (0) target = $region9
    $region8: #{tpu_custom_call.1} parent=1 // pred_region
      %s26 = ssub.s32 512, 512
      %27 = vsyncadd [#allocation6], %s26
      %s28 = sshll.u32 [#allocation5], 4
      %s29 = int_to_ptr.vmem [resolvable:$true] %s28
      %34 = dma.hbm_to_vmem [thread:$0]  %s1, 512, %s29, [#allocation6], 128, 128, 8
    $region9: #{tpu_custom_call.1} parent=1 // pred_fallthru
      _
    // Predicated region
    $region10: #{tpu_custom_call.1} parent=1 // pred_check
      _
    $region11: #{tpu_custom_call.1} parent=1 // pred_check_branch
      %36 = sbr.rel (0) target = $region13
    $region12: #{tpu_custom_call.1} parent=1 // pred_region
      %s38 = ssub.s32 128, 128
      %39 = vsyncadd [#allocation6], %s38
      %s41 = sshll.u32 [#allocation7], 4
      %s42 = int_to_ptr.vmem [resolvable:$true] %s41
      %44 = dma.hbm_to_vmem [thread:$0]  %s2, 128, %s42, [#allocation6]
    $region13: #{tpu_custom_call.1} parent=1 // pred_fallthru
      _
    // Predicated region
    $region14: #{tpu_custom_call.1} parent=1 // pred_check
      _
    $region15: #{tpu_custom_call.1} parent=1 // pred_check_branch
      %46 = sbr.rel (0) target = $region17
    $region16: #{tpu_custom_call.1} parent=1 // pred_region
      %47 = dma.done [#allocation3], 256
    $region17: #{tpu_custom_call.1} parent=1 // pred_fallthru
      _
    // Predicated region
    $region18: #{tpu_custom_call.1} parent=1 // pred_check
      _
    $region19: #{tpu_custom_call.1} parent=1 // pred_check_branch
      %49 = sbr.rel (0) target = $region21
    $region20: #{tpu_custom_call.1} parent=1 // pred_region
      %50 = dma.done [#allocation6], 512
    $region21: #{tpu_custom_call.1} parent=1 // pred_fallthru
      _
    // Predicated region
    $region22: #{tpu_custom_call.1} parent=1 // pred_check
      _
    $region23: #{tpu_custom_call.1} parent=1 // pred_check_branch
      %52 = sbr.rel (0) target = $region25
    $region24: #{tpu_custom_call.1} parent=1 // pred_region
      %53 = dma.done [#allocation6], 128
    $region25: #{tpu_custom_call.1} parent=1 // pred_fallthru
      _
    %v54 = vld [vmem:[#allocation7] sm:$0xff]
    %v55 = vld [vmem:[#allocation2] sm:$0xff]
    %v56 = vld [vmem:[#allocation2 + $0x8] sm:$0xff]
    %v57 = vld [vmem:[#allocation5] sm:$0xff]
    %v58 = vld [vmem:[#allocation5 + $0x8] sm:$0xff]
    %v59 = vld [vmem:[#allocation5 + $0x10] sm:$0xff]
    %v60 = vld [vmem:[#allocation5 + $0x18] sm:$0xff]
    %v61 = vlaneseq
    %v62 = vshrl.u32 %v61, 7
    %v63 = vsub.s32 0, %v62
    %v64 = vrot.slane %v54, %v63
    %vm65 = vcmask 261120
    %v67 = vsel %vm65, %v55, 0
    %v70 = vsel %vm65, %v56, 0
    %72 = vmatprep.subr.mxu0 0.0
    %73 = vmatpush1.msra.mxu0 %v57
    %74 = vmatprep.subr.mxu0 0.0
    %75 = vmatpush1.msra.mxu0 %v58
    %76 = vmatprep.subr.mxu0 0.0
    %77 = vmatpush1.msra.mxu0 %v59
    %78 = vmatprep.subr.mxu0 0.0
    %79 = vmatpush1.msra.mxu0 %v60
    %80 = vmatprep.subr.mxu0 0.0
    %81 = vmatpush1.msra.mxu0 0.0
    %82 = vmatprep.subr.mxu0 0.0
    %83 = vmatpush1.msra.mxu0 0.0
    %84 = vmatprep.subr.mxu0 0.0
    %85 = vmatpush1.msra.mxu0 0.0
    %86 = vmatprep.subr.mxu0 0.0
    %87 = vmatpush1.msra.mxu0 0.0
    %88 = vmatprep.subr.mxu0 0.0
    %89 = vmatpush1.msra.mxu0 0.0
    %90 = vmatprep.subr.mxu0 0.0
    %91 = vmatpush1.msra.mxu0 0.0
    %92 = vmatprep.subr.mxu0 0.0
    %93 = vmatpush1.msra.mxu0 0.0
    %94 = vmatprep.subr.mxu0 0.0
    %95 = vmatpush1.msra.mxu0 0.0
    %96 = vmatprep.subr.mxu0 0.0
    %97 = vmatpush1.msra.mxu0 0.0
    %98 = vmatprep.subr.mxu0 0.0
    %99 = vmatpush1.msra.mxu0 0.0
    %100 = vmatprep.subr.mxu0 0.0
    %101 = vmatpush1.msra.mxu0 0.0
    %102 = vmatprep.subr.mxu0 0.0
    %103 = vmatpush1.msra.mxu0 0.0
    %104 = vmatprep.subr.mxu0 0.0
    %105 = vmatpush1.msra.mxu0 0.0
    %106 = vmatprep.subr.mxu0 0.0
    %107 = vmatpush1.msra.mxu0 0.0
    %108 = vmatprep.subr.mxu0 0.0
    %109 = vmatpush1.msra.mxu0 0.0
    %110 = vmatprep.subr.mxu0 0.0
    %111 = vmatpush1.msra.mxu0 0.0
    %112 = vmatprep.subr.mxu0 0.0
    %113 = vmatpush1.msra.mxu0 0.0
    %114 = vmatprep.subr.mxu0 0.0
    %115 = vmatpush1.msra.mxu0 0.0
    %116 = vmatprep.subr.mxu0 0.0
    %117 = vmatpush1.msra.mxu0 0.0
    %118 = vmatprep.subr.mxu0 0.0
    %119 = vmatpush1.msra.mxu0 0.0
    %120 = vmatprep.subr.mxu0 0.0
    %121 = vmatpush1.msra.mxu0 0.0
    %122 = vmatprep.subr.mxu0 0.0
    %123 = vmatpush1.msra.mxu0 0.0
    %124 = vmatprep.subr.mxu0 0.0
    %125 = vmatpush1.msra.mxu0 0.0
    %126 = vmatprep.subr.mxu0 0.0
    %127 = vmatpush1.msra.mxu0 0.0
    %128 = vmatprep.subr.mxu0 0.0
    %129 = vmatpush1.msra.mxu0 0.0
    %130 = vmatprep.subr.mxu0 0.0
    %131 = vmatpush1.msra.mxu0 0.0
    %132 = vmatprep.subr.mxu0 0.0
    %133 = vmatpush1.msra.mxu0 0.0
    %134 = vmatprep.subr.mxu0 0.0
    %135 = vmatpush1.msra.mxu0 0.0
    %136 = vmatprep.mubr.f32.mxu0 0.0
    %137 = vmatmul.mubr.f32.gmra.mrb[0].mxu0 %v67
    %v138 = vpop.f32.mrb[0].mxu0
    %v139 = vadd.f32 %v64, %v138
    %v140 = vpop.f32.mrb[0].mxu0
    %141 = vmatprep.mubr.f32.mxu0 0.0
    %142 = vmatmul.mubr.f32.gmra.mrb[0].mxu0 %v70
    %v143 = vpop.f32.mrb[0].mxu0
    %v144 = vadd.f32 %v64, %v143
    %v145 = vpop.f32.mrb[0].mxu0
    %146 = vdwg.mxu0
    %v147 = vsel %vm65, %v139, 0.0
    %148 = vadd.xlane.f32.xlu0 %v147
    %v149 = vpop.xlane.xlu0 %148
    %v150 = vsel %vm65, %v144, 0.0
    %151 = vadd.xlane.f32.xlu0 %v150
    %v152 = vpop.xlane.xlu0 %151
    %v153 = vrcp.pop 32.0
    %v154 = vmul.f32 %v149, %v153
    %v155 = vmul.f32 %v152, %v153
    %v156 = vsub.f32 %v139, %v154
    %v157 = vsub.f32 %v144, %v155
    %v158 = vmul.f32 %v156, %v156
    %v159 = vmul.f32 %v157, %v157
    %v160 = vsel %vm65, %v158, 0.0
    %161 = vadd.xlane.f32.xlu0 %v160
    %v162 = vpop.xlane.xlu0 %161
    %v163 = vsel %vm65, %v159, 0.0
    %164 = vadd.xlane.f32.xlu0 %v163
    %v165 = vpop.xlane.xlu0 %164
    %v166 = vmul.f32 %v162, %v153
    %v167 = vmul.f32 %v165, %v153
    %v168 = vadd.f32 %v166, 1e-05
    %v169 = vadd.f32 %v167, 1e-05
    %v170 = vrsqrt.pop %v168
    %v171 = vrsqrt.pop %v169
    %v172 = vmul.f32 %v156, %v170
    %v173 = vmul.f32 %v157, %v171
    %v174 = vlaneseq
    %v175 = vshrl.u32 %v174, 7
    %v176 = vsub.s32 1, %v175
    %v177 = vrot.slane %v54, %v176
    %v178 = vmul.f32 %v172, %v177
    %v179 = vmul.f32 %v173, %v177
    %v180 = vlaneseq
    %v181 = vshrl.u32 %v180, 7
    %v182 = vsub.s32 2, %v181
    %v183 = vrot.slane %v54, %v182
    %v184 = vadd.f32 %v178, %v183
    %v185 = vadd.f32 %v179, %v183
    %v186 = vmul.f32 %v184, %v184
    %v187 = vmul.f32 %v185, %v185
    %v188 = vsel %vm65, %v186, 0.0
    %189 = vadd.xlane.f32.xlu0 %v188
    %v190 = vpop.xlane.xlu0 %189
    %v191 = vsel %vm65, %v187, 0.0
    %192 = vadd.xlane.f32.xlu0 %v191
    %v193 = vpop.xlane.xlu0 %192
    %v194 = vadd.f32 %v190, 1e-12
    %v195 = vadd.f32 %v193, 1e-12
    %v196 = vrsqrt.pop %v194
    %v197 = vrsqrt.pop %v195
    %v198 = vmul.f32 %v184, %v196
    %v199 = vmul.f32 %v185, %v197
    %200 = vst.msk [vmem:[#allocation8] sm:$0xff] %vm65, %v198
    %201 = vst.msk [vmem:[#allocation8 + $0x8] sm:$0xff] %vm65, %v199
    // Predicated region
    $region26: #{tpu_custom_call.1} parent=1 // pred_check
      _
    $region27: #{tpu_custom_call.1} parent=1 // pred_check_branch
      %203 = sbr.rel (0) target = $region29
    $region28: #{tpu_custom_call.1} parent=1 // pred_region
      %s205 = ssub.s32 256, 256
      %206 = vsyncadd [#allocation4], %s205
      %s207 = sshll.u32 [#allocation8], 4
      %s208 = int_to_ptr.vmem [resolvable:$true] %s207
      %213 = dma.vmem_to_hbm [thread:$0]  %s208, 256, %s3, [#allocation4], 128, 128, 8
    $region29: #{tpu_custom_call.1} parent=1 // pred_fallthru
      _
    // Predicated region
    $region30: #{tpu_custom_call.1} parent=1 // pred_check
      _
    $region31: #{tpu_custom_call.1} parent=1 // pred_check_branch
      %215 = sbr.rel (0) target = $region33
    $region32: #{tpu_custom_call.1} parent=1 // pred_region
      %216 = dma.done [#allocation4], 256
    $region33: #{tpu_custom_call.1} parent=1 // pred_fallthru
      _
    %217 = vsyncpa [#allocation3], 1
    %218 = vsyncpa [#allocation6], 1
    %219 = vsyncpa [#allocation4], 1

// kernel: tpu_custom_call.1
$region0: #{tpu_custom_call.1}
  #allocation0 [shape = 'u32[]', space=smem, size = 0x4, offset = 0x4, fixed_abs, tag = 'smem constant byte address 0x4 - core index']
  #allocation1 [shape = 'u32[144,128]{1,0:T(1,128)}', space=vmem, size = 0x12000, scoped, tag = 'internal scratch']
  %s0 = inlined_call_operand.hbm [shape: f32[16,32], index: 0, kind: input, shape index: {}]
  %s1 = inlined_call_operand.hbm [shape: f32[32,32], index: 1, kind: input, shape index: {}]
  %s2 = inlined_call_operand.hbm [shape: f32[8,32], index: 2, kind: input, shape index: {}]
  %s3 = inlined_call_operand.hbm [shape: f32[16,32], index: 3, kind: output, shape index: {}]
  %s4 = sld [smem:[#allocation0]]
  $region34: #{tpu_custom_call.1} parent=0
    _
  %s6 = ssub.s32 1, %s4
  %s7 = scalar_select 0, %s6, %s4
  $region1: #{tpu_custom_call.1} parent=0
    #allocation2 [shape = 'u8[8192]{0}', space=vmem, size = 0x2000, scoped, tag = 'input window, operand 0, single buffered']
    #allocation3 [shape = 's32[1]{0}', space=sflag, size = 0x4, scoped, tag = 'scoped memory for tpu_custom_call.1']
    #allocation4 [shape = 's32[1]{0}', space=sflag, size = 0x4, scoped, tag = 'scoped memory for tpu_custom_call.1']
    #allocation5 [shape = 'u8[16384]{0}', space=vmem, size = 0x4000, scoped, tag = 'input window, operand 1, single buffered']
    #allocation6 [shape = 's32[1]{0}', space=sflag, size = 0x4, scoped, tag = 'scoped memory for tpu_custom_call.1']
    #allocation7 [shape = 'u8[4096]{0}', space=vmem, size = 0x1000, scoped, tag = 'input window, operand 2, single buffered']
    #allocation8 [shape = 'u8[8192]{0}', space=vmem, size = 0x2000, scoped, tag = 'output window, operand 0, single buffered']
    %8 = vsyncpa [#allocation3], 0
    %9 = vsyncpa [#allocation6], 0
    %10 = vsyncpa [#allocation4], 0
    // Predicated region
    $region2: #{tpu_custom_call.1} parent=1 // pred_check
      _
    $region3: #{tpu_custom_call.1} parent=1 // pred_check_branch
      %12 = sbr.rel (0) target = $region5
    $region4: #{tpu_custom_call.1} parent=1 // pred_region
      %s14 = ssub.s32 256, 256
      %15 = vsyncadd [#allocation3], %s14
      %s16 = sshll.u32 [#allocation2], 4
      %s17 = int_to_ptr.vmem [resolvable:$true] %s16
      %22 = dma.hbm_to_vmem [thread:$0]  %s0, 256, %s17, [#allocation3], 128, 128, 8
    $region5: #{tpu_custom_call.1} parent=1 // pred_fallthru
      _
    // Predicated region
    $region6: #{tpu_custom_call.1} parent=1 // pred_check
      _
    $region7: #{tpu_custom_call.1} parent=1 // pred_check_branch
      %24 = sbr.rel (0) target = $region9
    $region8: #{tpu_custom_call.1} parent=1 // pred_region
      %s26 = ssub.s32 512, 512
      %27 = vsyncadd [#allocation6], %s26
      %s28 = sshll.u32 [#allocation5], 4
      %s29 = int_to_ptr.vmem [resolvable:$true] %s28
      %34 = dma.hbm_to_vmem [thread:$0]  %s1, 512, %s29, [#allocation6], 128, 128, 8
    $region9: #{tpu_custom_call.1} parent=1 // pred_fallthru
      _
    // Predicated region
    $region10: #{tpu_custom_call.1} parent=1 // pred_check
      _
    $region11: #{tpu_custom_call.1} parent=1 // pred_check_branch
      %36 = sbr.rel (0) target = $region13
    $region12: #{tpu_custom_call.1} parent=1 // pred_region
      %s38 = ssub.s32 128, 128
      %39 = vsyncadd [#allocation6], %s38
      %s41 = sshll.u32 [#allocation7], 4
      %s42 = int_to_ptr.vmem [resolvable:$true] %s41
      %44 = dma.hbm_to_vmem [thread:$0]  %s2, 128, %s42, [#allocation6]
    $region13: #{tpu_custom_call.1} parent=1 // pred_fallthru
      _
    // Predicated region
    $region14: #{tpu_custom_call.1} parent=1 // pred_check
      _
    $region15: #{tpu_custom_call.1} parent=1 // pred_check_branch
      %46 = sbr.rel (0) target = $region17
    $region16: #{tpu_custom_call.1} parent=1 // pred_region
      %47 = dma.done [#allocation3], 256
    $region17: #{tpu_custom_call.1} parent=1 // pred_fallthru
      _
    // Predicated region
    $region18: #{tpu_custom_call.1} parent=1 // pred_check
      _
    $region19: #{tpu_custom_call.1} parent=1 // pred_check_branch
      %49 = sbr.rel (0) target = $region21
    $region20: #{tpu_custom_call.1} parent=1 // pred_region
      %50 = dma.done [#allocation6], 512
    $region21: #{tpu_custom_call.1} parent=1 // pred_fallthru
      _
    // Predicated region
    $region22: #{tpu_custom_call.1} parent=1 // pred_check
      _
    $region23: #{tpu_custom_call.1} parent=1 // pred_check_branch
      %52 = sbr.rel (0) target = $region25
    $region24: #{tpu_custom_call.1} parent=1 // pred_region
      %53 = dma.done [#allocation6], 128
    $region25: #{tpu_custom_call.1} parent=1 // pred_fallthru
      _
    %v54 = vld [vmem:[#allocation7] sm:$0xff]
    %v55 = vld [vmem:[#allocation2] sm:$0xff]
    %v56 = vld [vmem:[#allocation2 + $0x8] sm:$0xff]
    %v57 = vld [vmem:[#allocation5] sm:$0xff]
    %v58 = vld [vmem:[#allocation5 + $0x8] sm:$0xff]
    %v59 = vld [vmem:[#allocation5 + $0x10] sm:$0xff]
    %v60 = vld [vmem:[#allocation5 + $0x18] sm:$0xff]
    %v61 = vlaneseq
    %v62 = vshrl.u32 %v61, 7
    %v63 = vsub.s32 0, %v62
    %v64 = vrot.slane %v54, %v63
    %vm65 = vcmask 261120
    %v67 = vsel %vm65, %v55, 0
    %v70 = vsel %vm65, %v56, 0
    %72 = vmatprep.subr.mxu0 0.0
    %73 = vmatpush1.msra.mxu0 %v57
    %74 = vmatprep.subr.mxu0 0.0
    %75 = vmatpush1.msra.mxu0 %v58
    %76 = vmatprep.subr.mxu0 0.0
    %77 = vmatpush1.msra.mxu0 %v59
    %78 = vmatprep.subr.mxu0 0.0
    %79 = vmatpush1.msra.mxu0 %v60
    %80 = vmatprep.subr.mxu0 0.0
    %81 = vmatpush1.msra.mxu0 0.0
    %82 = vmatprep.subr.mxu0 0.0
    %83 = vmatpush1.msra.mxu0 0.0
    %84 = vmatprep.subr.mxu0 0.0
    %85 = vmatpush1.msra.mxu0 0.0
    %86 = vmatprep.subr.mxu0 0.0
    %87 = vmatpush1.msra.mxu0 0.0
    %88 = vmatprep.subr.mxu0 0.0
    %89 = vmatpush1.msra.mxu0 0.0
    %90 = vmatprep.subr.mxu0 0.0
    %91 = vmatpush1.msra.mxu0 0.0
    %92 = vmatprep.subr.mxu0 0.0
    %93 = vmatpush1.msra.mxu0 0.0
    %94 = vmatprep.subr.mxu0 0.0
    %95 = vmatpush1.msra.mxu0 0.0
    %96 = vmatprep.subr.mxu0 0.0
    %97 = vmatpush1.msra.mxu0 0.0
    %98 = vmatprep.subr.mxu0 0.0
    %99 = vmatpush1.msra.mxu0 0.0
    %100 = vmatprep.subr.mxu0 0.0
    %101 = vmatpush1.msra.mxu0 0.0
    %102 = vmatprep.subr.mxu0 0.0
    %103 = vmatpush1.msra.mxu0 0.0
    %104 = vmatprep.subr.mxu0 0.0
    %105 = vmatpush1.msra.mxu0 0.0
    %106 = vmatprep.subr.mxu0 0.0
    %107 = vmatpush1.msra.mxu0 0.0
    %108 = vmatprep.subr.mxu0 0.0
    %109 = vmatpush1.msra.mxu0 0.0
    %110 = vmatprep.subr.mxu0 0.0
    %111 = vmatpush1.msra.mxu0 0.0
    %112 = vmatprep.subr.mxu0 0.0
    %113 = vmatpush1.msra.mxu0 0.0
    %114 = vmatprep.subr.mxu0 0.0
    %115 = vmatpush1.msra.mxu0 0.0
    %116 = vmatprep.subr.mxu0 0.0
    %117 = vmatpush1.msra.mxu0 0.0
    %118 = vmatprep.subr.mxu0 0.0
    %119 = vmatpush1.msra.mxu0 0.0
    %120 = vmatprep.subr.mxu0 0.0
    %121 = vmatpush1.msra.mxu0 0.0
    %122 = vmatprep.subr.mxu0 0.0
    %123 = vmatpush1.msra.mxu0 0.0
    %124 = vmatprep.subr.mxu0 0.0
    %125 = vmatpush1.msra.mxu0 0.0
    %126 = vmatprep.subr.mxu0 0.0
    %127 = vmatpush1.msra.mxu0 0.0
    %128 = vmatprep.subr.mxu0 0.0
    %129 = vmatpush1.msra.mxu0 0.0
    %130 = vmatprep.subr.mxu0 0.0
    %131 = vmatpush1.msra.mxu0 0.0
    %132 = vmatprep.subr.mxu0 0.0
    %133 = vmatpush1.msra.mxu0 0.0
    %134 = vmatprep.subr.mxu0 0.0
    %135 = vmatpush1.msra.mxu0 0.0
    %136 = vmatprep.mubr.f32.mxu0 0.0
    %137 = vmatmul.mubr.f32.gmra.mrb[0].mxu0 %v67
    %v138 = vpop.f32.mrb[0].mxu0
    %v139 = vadd.f32 %v64, %v138
    %v140 = vpop.f32.mrb[0].mxu0
    %141 = vmatprep.mubr.f32.mxu0 0.0
    %142 = vmatmul.mubr.f32.gmra.mrb[0].mxu0 %v70
    %v143 = vpop.f32.mrb[0].mxu0
    %v144 = vadd.f32 %v64, %v143
    %v145 = vpop.f32.mrb[0].mxu0
    %146 = vdwg.mxu0
    %v147 = vsel %vm65, %v139, 0.0
    %148 = vadd.xlane.f32.xlu0 %v147
    %v149 = vpop.xlane.xlu0 %148
    %v150 = vsel %vm65, %v144, 0.0
    %151 = vadd.xlane.f32.xlu0 %v150
    %v152 = vpop.xlane.xlu0 %151
    %v153 = vrcp.pop 32.0
    %v154 = vmul.f32 %v149, %v153
    %v155 = vmul.f32 %v152, %v153
    %v156 = vsub.f32 %v139, %v154
    %v157 = vsub.f32 %v144, %v155
    %v158 = vmul.f32 %v156, %v156
    %v159 = vmul.f32 %v157, %v157
    %v160 = vsel %vm65, %v158, 0.0
    %161 = vadd.xlane.f32.xlu0 %v160
    %v162 = vpop.xlane.xlu0 %161
    %v163 = vsel %vm65, %v159, 0.0
    %164 = vadd.xlane.f32.xlu0 %v163
    %v165 = vpop.xlane.xlu0 %164
    %v166 = vmul.f32 %v162, %v153
    %v167 = vmul.f32 %v165, %v153
    %v168 = vadd.f32 %v166, 1e-05
    %v169 = vadd.f32 %v167, 1e-05
    %v170 = vrsqrt.pop %v168
    %v171 = vrsqrt.pop %v169
    %v172 = vmul.f32 %v156, %v170
    %v173 = vmul.f32 %v157, %v171
    %v174 = vlaneseq
    %v175 = vshrl.u32 %v174, 7
    %v176 = vsub.s32 1, %v175
    %v177 = vrot.slane %v54, %v176
    %v178 = vmul.f32 %v172, %v177
    %v179 = vmul.f32 %v173, %v177
    %v180 = vlaneseq
    %v181 = vshrl.u32 %v180, 7
    %v182 = vsub.s32 2, %v181
    %v183 = vrot.slane %v54, %v182
    %v184 = vadd.f32 %v178, %v183
    %v185 = vadd.f32 %v179, %v183
    %v186 = vmul.f32 %v184, %v184
    %v187 = vmul.f32 %v185, %v185
    %v188 = vsel %vm65, %v186, 0.0
    %189 = vadd.xlane.f32.xlu0 %v188
    %v190 = vpop.xlane.xlu0 %189
    %v191 = vsel %vm65, %v187, 0.0
    %192 = vadd.xlane.f32.xlu0 %v191
    %v193 = vpop.xlane.xlu0 %192
    %v194 = vadd.f32 %v190, 1e-12
    %v195 = vadd.f32 %v193, 1e-12
    %v196 = vrsqrt.pop %v194
    %v197 = vrsqrt.pop %v195
    %v198 = vmul.f32 %v184, %v196
    %v199 = vmul.f32 %v185, %v197
    %200 = vst.msk [vmem:[#allocation8] sm:$0xff] %vm65, %v198
    %201 = vst.msk [vmem:[#allocation8 + $0x8] sm:$0xff] %vm65, %v199
    // Predicated region
    $region26: #{tpu_custom_call.1} parent=1 // pred_check
      _
    $region27: #{tpu_custom_call.1} parent=1 // pred_check_branch
      %203 = sbr.rel (0) target = $region29
    $region28: #{tpu_custom_call.1} parent=1 // pred_region
      %s205 = ssub.s32 256, 256
      %206 = vsyncadd [#allocation4], %s205
      %s207 = sshll.u32 [#allocation8], 4
      %s208 = int_to_ptr.vmem [resolvable:$true] %s207
      %213 = dma.vmem_to_hbm [thread:$0]  %s208, 256, %s3, [#allocation4], 128, 128, 8
    $region29: #{tpu_custom_call.1} parent=1 // pred_fallthru
      _
    // Predicated region
    $region30: #{tpu_custom_call.1} parent=1 // pred_check
      _
    $region31: #{tpu_custom_call.1} parent=1 // pred_check_branch
      %215 = sbr.rel (0) target = $region33
    $region32: #{tpu_custom_call.1} parent=1 // pred_region
      %216 = dma.done [#allocation4], 256
    $region33: #{tpu_custom_call.1} parent=1 // pred_fallthru
      _
    %217 = vsyncpa [#allocation3], 1
    %218 = vsyncpa [#allocation6], 1
    %219 = vsyncpa [#allocation4], 1

</llo_original>
